<compile_context>
chip_gen: v7x
topology: tpu7x:2x2x1
jax: 0.10.0
libtpu: 0.0.40
codegen_flags: <defaults>
</compile_context>

<pallas_src>
import functools
import math

import jax
import jax.numpy as jnp
from jax import lax
from jax.experimental import pallas as pl
from jax.experimental.pallas import tpu as pltpu


def build_fixed_embedding_table(c_in: int, d_model: int) -> jnp.ndarray:
    """Replicates FixedEmbedding.__init__ weight construction (d_model assumed even)."""
    position = jnp.arange(0, c_in, dtype=jnp.float32)[:, None]               # (c_in, 1)
    div_term = jnp.exp(
        jnp.arange(0, d_model, 2, dtype=jnp.float32) * -(math.log(10000.0) / d_model)
    )                                                                         # (d_model//2,)
    ang = position * div_term                                                 # (c_in, d_model//2)
    w = jnp.zeros((c_in, d_model), dtype=jnp.float32)
    w = w.at[:, 0::2].set(jnp.sin(ang))
    w = w.at[:, 1::2].set(jnp.cos(ang))
    return w


def _round_up(x: int, m: int) -> int:
    return ((x + m - 1) // m) * m


def _embed_kernel(idx_ref, table_ref, out_ref, *, pack: int):
    # idx_ref   : (TILE_M, pack)            int32 -- precomputed lane targets idx + j*c_in,
    #                                                -1 marks invalid/padded slots (-> zero row chunk)
    # table_ref : (pack*c_in, width)        f32   -- block-diag replicated table, VMEM-resident
    # out_ref   : (TILE_M, width)                 -- lane-dense packed output tile
    idx_off = idx_ref[...]                                            # (TILE_M, pack)
    lanes = table_ref.shape[0]                                        # pack * c_in
    # Single-row iota; broadcasts inside the compares (no full-tile iota materialized per step).
    lane_ids = lax.broadcasted_iota(jnp.int32, (1, lanes), 1)         # (1, lanes)

    # OR-accumulate the `pack` compares as booleans, cast to f32 exactly once.
    hit = lane_ids == idx_off[:, 0:1]
    for j in range(1, pack):                                          # tiny static unroll
        hit = jnp.logical_or(hit, lane_ids == idx_off[:, j:j + 1])
    one_hot = hit.astype(jnp.float32)                                 # (TILE_M, lanes)

    # Single MXU contraction emits the whole 128-lane packed row; f32 accumulate, cast at store.
    out_ref[...] = jnp.dot(
        one_hot, table_ref[...], preferred_element_type=jnp.float32
    ).astype(out_ref.dtype)


def fixed_embedding(
    x: jnp.ndarray,
    table: jnp.ndarray,
    *,
    tile_m: int = 1024,
    out_dtype=jnp.float32,
) -> jnp.ndarray:
    """x: integer indices of shape (...,) (any integer dtype). Returns (..., d_model) out_dtype."""
    c_in, d_model = table.shape
    batch_shape = x.shape
    idx_flat = x.reshape(-1).astype(jnp.int32)
    n_tokens = idx_flat.shape[0]

    # Pack several tokens per output row so stores are 128-lane dense.
    if d_model < 128 and 128 % d_model == 0:
        pack = 128 // d_model
    else:
        pack = 1
    width = pack * d_model

    # ---- Adaptive row-tile sizing (perf review #1/#2/#3) --------------------------------------
    m = pl.cdiv(n_tokens, pack)                       # packed output rows needed
    cap = max(8, _round_up(int(tile_m), 8))           # largest allowed tile (default 1024 rows)
    n_steps = pl.cdiv(m, cap)
    if n_steps == 1 and m >= 16:
        # Guarantee >=2 grid steps when there's enough work so the "parallel" row axis
        # can shard across both TensorCores on v7x.
        n_steps = 2
    tile_rows = _round_up(pl.cdiv(m, n_steps), 8)     # multiple of 8 sublanes; keeps padding tiny
    m_padded = _round_up(m, tile_rows)

    pad = m_padded * pack - n_tokens
    if pad:
        # Pad with -1 => invalid => zero rows (discarded after the kernel anyway).
        idx_flat = jnp.concatenate([idx_flat, jnp.full((pad,), -1, jnp.int32)])
    idx2d = idx_flat.reshape(m_padded, pack)

    # ---- Precompute packed lane offsets in the wrapper (perf review #4 + correctness fix) -----
    # Valid idx -> idx + j*c_in (its group's lane range); invalid/padded -> -1 (matches no lane).
    offsets = (jnp.arange(pack, dtype=jnp.int32) * c_in)[None, :]     # (1, pack)
    valid = (idx2d >= 0) & (idx2d < c_in)
    idx_off = jnp.where(valid, idx2d + offsets, jnp.int32(-1))        # (m_padded, pack)

    # Block-diagonal replicated table so one matmul emits the whole packed (lane-dense) row.
    if pack == 1:
        packed_table = table.astype(jnp.float32)
    else:
        packed_table = jnp.zeros((pack * c_in, width), dtype=jnp.float32)
        for j in range(pack):
            packed_table = packed_table.at[
                j * c_in:(j + 1) * c_in, j * d_model:(j + 1) * d_model
            ].set(table.astype(jnp.float32))

    grid = (m_padded // tile_rows,)
    kernel = functools.partial(_embed_kernel, pack=pack)
    out_bytes = jnp.dtype(out_dtype).itemsize

    cost = pl.CostEstimate(
        flops=2 * m_padded * (pack * c_in) * width,
        transcendentals=0,
        bytes_accessed=(m_padded * width * out_bytes     # output writeback (dominant)
                        + m_padded * pack * 4            # indices in
                        + pack * c_in * width * 4),      # table (once)
    )

    out = pl.pallas_call(
        kernel,
        out_shape=jax.ShapeDtypeStruct((m_padded, width), out_dtype),
        grid=grid,
        in_specs=[
            # idx tile marches with the grid (double-buffered). NOTE: lane-sparse (pack lanes of
            # 128 used) -> ~(tile_rows x 128 x 4 B) per VMEM buffer; still tiny at tile_rows=2048.
            pl.BlockSpec((tile_rows, pack), lambda i: (i, 0)),
            # Table: constant block index -> fetched once, VMEM-resident across all steps.
            # Left on default buffering (2 x ~48 KiB) on purpose; VMEM is a non-issue here.
            pl.BlockSpec((pack * c_in, width), lambda i: (0, 0)),
        ],
        out_specs=pl.BlockSpec((tile_rows, width), lambda i: (i, 0)),
        compiler_params=pltpu.CompilerParams(
            # Row tiles are independent -> shard across both TensorCores on v7x.
            dimension_semantics=("parallel",),
        ),
        cost_estimate=cost,
    )(idx_off, packed_table)

    # Unpack the lane-dense (m_padded, 128) slab back to (..., d_model).
    out = out.reshape(m_padded * pack, d_model)[:n_tokens]
    return out.reshape(*batch_shape, d_model)


if __name__ == "__main__":
    c_in = 24       # e.g. hour-of-day vocabulary, as used in TemporalEmbedding
    d_model = 32
    B, S = 2, 8

    table = build_fixed_embedding_table(c_in, d_model)

    key = jax.random.PRNGKey(0)
    x = jax.random.randint(key, (B, S), minval=0, maxval=c_in, dtype=jnp.int32)

    out = fixed_embedding(x, table)
    out = jax.block_until_ready(out)

    # Reference check: plain JAX gather of the same fixed table.
    ref = table[x]
    assert out.shape == (B, S, d_model)
    assert jnp.allclose(out, ref, atol=1e-6), "mismatch vs reference gather"

    print("KERNEL_OK")
</pallas_src>

<mosaic_0001>
module attributes {stable_mosaic.version = 11 : i64} {
  func.func @_embed_kernel(%arg0: i32, %arg1: memref<8x4xi32, #tpu.memory_space<vmem>>, %arg2: memref<96x128xf32, #tpu.memory_space<vmem>>, %arg3: memref<8x128xf32, #tpu.memory_space<vmem>>) attributes {dimension_semantics = [#tpu.dimension_semantics<parallel>], iteration_bounds = array<i64: 1>, scalar_prefetch = 0 : i64, scratch_operands = 0 : i64, tpu.core_type = #tpu.core_type<tc>, window_params = [{transform_indices = @transform_0, window_bounds = array<i64: 8, 4>}, {pipeline_mode = #tpu.pipeline_mode<synchronous>, transform_indices = @transform_1, window_bounds = array<i64: 96, 128>}, {transform_indices = @transform_2, window_bounds = array<i64: 8, 128>}]} {
    %c0 = arith.constant 0 : index
    %c0_0 = arith.constant 0 : index
    %0 = vector.load %arg1[%c0, %c0_0] : memref<8x4xi32, #tpu.memory_space<vmem>>, vector<8x4xi32>
    %1 = tpu.iota {dimensions = array<i32: 1>} : vector<1x96xi32>
    %2 = vector.extract_strided_slice %0 {offsets = [0, 0], sizes = [8, 1], strides = [1, 1]} : vector<8x4xi32> to vector<8x1xi32>
    %3 = vector.broadcast %1 : vector<1x96xi32> to vector<8x96xi32>
    %4 = vector.broadcast %2 : vector<8x1xi32> to vector<8x96xi32>
    %5 = arith.cmpi eq, %3, %4 : vector<8x96xi32>
    %6 = vector.extract_strided_slice %0 {offsets = [0, 1], sizes = [8, 1], strides = [1, 1]} : vector<8x4xi32> to vector<8x1xi32>
    %7 = vector.broadcast %1 : vector<1x96xi32> to vector<8x96xi32>
    %8 = vector.broadcast %6 : vector<8x1xi32> to vector<8x96xi32>
    %9 = arith.cmpi eq, %7, %8 : vector<8x96xi32>
    %10 = arith.ori %5, %9 : vector<8x96xi1>
    %11 = vector.extract_strided_slice %0 {offsets = [0, 2], sizes = [8, 1], strides = [1, 1]} : vector<8x4xi32> to vector<8x1xi32>
    %12 = vector.broadcast %1 : vector<1x96xi32> to vector<8x96xi32>
    %13 = vector.broadcast %11 : vector<8x1xi32> to vector<8x96xi32>
    %14 = arith.cmpi eq, %12, %13 : vector<8x96xi32>
    %15 = arith.ori %10, %14 : vector<8x96xi1>
    %16 = vector.extract_strided_slice %0 {offsets = [0, 3], sizes = [8, 1], strides = [1, 1]} : vector<8x4xi32> to vector<8x1xi32>
    %17 = vector.broadcast %1 : vector<1x96xi32> to vector<8x96xi32>
    %18 = vector.broadcast %16 : vector<8x1xi32> to vector<8x96xi32>
    %19 = arith.cmpi eq, %17, %18 : vector<8x96xi32>
    %20 = arith.ori %15, %19 : vector<8x96xi1>
    %21 = arith.extui %20 : vector<8x96xi1> to vector<8x96xi32>
    %22 = arith.sitofp %21 : vector<8x96xi32> to vector<8x96xf32>
    %c0_1 = arith.constant 0 : index
    %c0_2 = arith.constant 0 : index
    %23 = vector.load %arg2[%c0_1, %c0_2] : memref<96x128xf32, #tpu.memory_space<vmem>>, vector<96x128xf32>
    %cst = arith.constant dense<0.000000e+00> : vector<8x128xf32>
    %24 = tpu.matmul %22, %23, %cst {dimension_numbers = #tpu.dot_dimension_numbers<[1], [0], [0], [1], [0, 0, 1, 1], [], []>} : vector<8x96xf32>, vector<96x128xf32>, vector<8x128xf32> -> vector<8x128xf32>
    %c0_3 = arith.constant 0 : index
    %c0_4 = arith.constant 0 : index
    %25 = vector.load %arg3[%c0_3, %c0_4] : memref<8x128xf32, #tpu.memory_space<vmem>>, vector<8x128xf32>
    tpu.vector_store %arg3[%c0_3, %c0_4], %24 {strides = array<i32>} : memref<8x128xf32, #tpu.memory_space<vmem>>, vector<8x128xf32>,
    return
  }
  func.func @transform_0(%arg0: i32) -> (i32, i32) {
    %c0_i32 = arith.constant 0 : i32
    %c0_i32_0 = arith.constant 0 : i32
    return %arg0, %c0_i32 : i32, i32
  }
  func.func @transform_1(%arg0: i32) -> (i32, i32) {
    %c0_i32 = arith.constant 0 : i32
    %c0_i32_0 = arith.constant 0 : i32
    %c0_i32_1 = arith.constant 0 : i32
    return %c0_i32, %c0_i32_0 : i32, i32
  }
  func.func @transform_2(%arg0: i32) -> (i32, i32) {
    %c0_i32 = arith.constant 0 : i32
    %c0_i32_0 = arith.constant 0 : i32
    return %arg0, %c0_i32 : i32, i32
  }
}

</mosaic_0001>

<llo_original>
// kernel: tpu_custom_call.1
$region0: #{tpu_custom_call.1}
  #allocation0 [shape = 'u32[]', space=smem, size = 0x4, offset = 0x4, fixed_abs, tag = 'smem constant byte address 0x4 - core index']
  #allocation1 [shape = 'u32[144,128]{1,0:T(1,128)}', space=vmem, size = 0x12000, scoped, tag = 'internal scratch']
  %s0 = inlined_call_operand.vmem [shape: s32[8,4], index: 0, kind: input, shape index: {}]
  %s1 = inlined_call_operand.hbm [shape: f32[96,128], index: 1, kind: input, shape index: {}]
  %s2 = inlined_call_operand.hbm [shape: f32[8,128], index: 2, kind: output, shape index: {}]
  %s3 = sld [smem:[#allocation0]]
  $region22: #{tpu_custom_call.1} parent=0
    _
  %s5 = ssub.s32 1, %s3
  %s6 = scalar_select 0, %s5, %s3
  $region1: #{tpu_custom_call.1} parent=0
    #allocation2 [shape = 'u8[49152]{0}', space=vmem, size = 0xc000, scoped, tag = 'input window, operand 1, single buffered']
    #allocation3 [shape = 's32[1]{0}', space=sflag, size = 0x4, scoped, tag = 'scoped memory for tpu_custom_call.1']
    #allocation4 [shape = 's32[1]{0}', space=sflag, size = 0x4, scoped, tag = 'scoped memory for tpu_custom_call.1']
    #allocation5 [shape = 'u8[4096]{0}', space=vmem, size = 0x1000, scoped, tag = 'output window, operand 0, single buffered']
    %7 = vsyncpa [#allocation3], 0
    %8 = vsyncpa [#allocation4], 0
    // Predicated region
    $region2: #{tpu_custom_call.1} parent=1 // pred_check
      _
    $region3: #{tpu_custom_call.1} parent=1 // pred_check_branch
      %10 = sbr.rel (0) target = $region5
    $region4: #{tpu_custom_call.1} parent=1 // pred_region
      _
    $region5: #{tpu_custom_call.1} parent=1 // pred_fallthru
      _
    // Predicated region
    $region6: #{tpu_custom_call.1} parent=1 // pred_check
      _
    $region7: #{tpu_custom_call.1} parent=1 // pred_check_branch
      %12 = sbr.rel (0) target = $region9
    $region8: #{tpu_custom_call.1} parent=1 // pred_region
      %s14 = ssub.s32 1536, 1536
      %15 = vsyncadd [#allocation3], %s14
      %s16 = sshll.u32 [#allocation2], 4
      %s17 = int_to_ptr.vmem [resolvable:$true] %s16
      %22 = dma.hbm_to_vmem [thread:$0]  %s1, 1536, %s17, [#allocation3], 128, 128, 8
    $region9: #{tpu_custom_call.1} parent=1 // pred_fallthru
      _
    // Predicated region
    $region10: #{tpu_custom_call.1} parent=1 // pred_check
      _
    $region11: #{tpu_custom_call.1} parent=1 // pred_check_branch
      %24 = sbr.rel (0) target = $region13
    $region12: #{tpu_custom_call.1} parent=1 // pred_region
      %25 = dma.done [#allocation3], 1536
    $region13: #{tpu_custom_call.1} parent=1 // pred_fallthru
      _
    %v26 = vld [vmem:[%s0] sm:$0xff]
    %v27 = vlaneseq
    %v28 = vand.u32 %v27, 127
    %29 = vset.pattern.permute.xlu0 0
    %30 = vperm.xlu0 %29, %v26
    %v31 = vpop.permute.xlu0 %30
    %vm32 = vcmp.eq.s32.totalorder %v28, %v31
    %33 = vset.pattern.permute.xlu0 1
    %34 = vperm.xlu0 %33, %v26
    %v35 = vpop.permute.xlu0 %34
    %vm36 = vcmp.eq.s32.totalorder %v28, %v35
    %vm37 = vmor %vm32, %vm36
    %38 = vset.pattern.permute.xlu0 2
    %39 = vperm.xlu0 %38, %v26
    %v40 = vpop.permute.xlu0 %39
    %vm41 = vcmp.eq.s32.totalorder %v28, %v40
    %vm42 = vmor %vm37, %vm41
    %43 = vset.pattern.permute.xlu0 3
    %44 = vperm.xlu0 %43, %v26
    %v45 = vpop.permute.xlu0 %44
    %vm46 = vcmp.eq.s32.totalorder %v28, %v45
    %vm47 = vmor %vm42, %vm46
    %v48 = vsel %vm47, 1, 0
    %v49 = vcvt.s32.f32 %v48
    %v50 = vld [vmem:[#allocation2] sm:$0xff]
    %v51 = vld [vmem:[#allocation2 + $0x8] sm:$0xff]
    %v52 = vld [vmem:[#allocation2 + $0x10] sm:$0xff]
    %v53 = vld [vmem:[#allocation2 + $0x18] sm:$0xff]
    %v54 = vld [vmem:[#allocation2 + $0x20] sm:$0xff]
    %v55 = vld [vmem:[#allocation2 + $0x28] sm:$0xff]
    %v56 = vld [vmem:[#allocation2 + $0x30] sm:$0xff]
    %v57 = vld [vmem:[#allocation2 + $0x38] sm:$0xff]
    %v58 = vld [vmem:[#allocation2 + $0x40] sm:$0xff]
    %v59 = vld [vmem:[#allocation2 + $0x48] sm:$0xff]
    %v60 = vld [vmem:[#allocation2 + $0x50] sm:$0xff]
    %v61 = vld [vmem:[#allocation2 + $0x58] sm:$0xff]
    %vm62 = vcmask 785408
    %v64 = vsel %vm62, %v49, 0
    %66 = vmatprep.subr.mxu0 0.0
    %67 = vmatpush1.msra.mxu0 %v50
    %68 = vmatprep.subr.mxu0 0.0
    %69 = vmatpush1.msra.mxu0 %v51
    %70 = vmatprep.subr.mxu0 0.0
    %71 = vmatpush1.msra.mxu0 %v52
    %72 = vmatprep.subr.mxu0 0.0
    %73 = vmatpush1.msra.mxu0 %v53
    %74 = vmatprep.subr.mxu0 0.0
    %75 = vmatpush1.msra.mxu0 %v54
    %76 = vmatprep.subr.mxu0 0.0
    %77 = vmatpush1.msra.mxu0 %v55
    %78 = vmatprep.subr.mxu0 0.0
    %79 = vmatpush1.msra.mxu0 %v56
    %80 = vmatprep.subr.mxu0 0.0
    %81 = vmatpush1.msra.mxu0 %v57
    %82 = vmatprep.subr.mxu0 0.0
    %83 = vmatpush1.msra.mxu0 %v58
    %84 = vmatprep.subr.mxu0 0.0
    %85 = vmatpush1.msra.mxu0 %v59
    %86 = vmatprep.subr.mxu0 0.0
    %87 = vmatpush1.msra.mxu0 %v60
    %88 = vmatprep.subr.mxu0 0.0
    %89 = vmatpush1.msra.mxu0 %v61
    %90 = vmatprep.subr.mxu0 0.0
    %91 = vmatpush1.msra.mxu0 0.0
    %92 = vmatprep.subr.mxu0 0.0
    %93 = vmatpush1.msra.mxu0 0.0
    %94 = vmatprep.subr.mxu0 0.0
    %95 = vmatpush1.msra.mxu0 0.0
    %96 = vmatprep.subr.mxu0 0.0
    %97 = vmatpush1.msra.mxu0 0.0
    %98 = vmatprep.subr.mxu0 0.0
    %99 = vmatpush1.msra.mxu0 0.0
    %100 = vmatprep.subr.mxu0 0.0
    %101 = vmatpush1.msra.mxu0 0.0
    %102 = vmatprep.subr.mxu0 0.0
    %103 = vmatpush1.msra.mxu0 0.0
    %104 = vmatprep.subr.mxu0 0.0
    %105 = vmatpush1.msra.mxu0 0.0
    %106 = vmatprep.subr.mxu0 0.0
    %107 = vmatpush1.msra.mxu0 0.0
    %108 = vmatprep.subr.mxu0 0.0
    %109 = vmatpush1.msra.mxu0 0.0
    %110 = vmatprep.subr.mxu0 0.0
    %111 = vmatpush1.msra.mxu0 0.0
    %112 = vmatprep.subr.mxu0 0.0
    %113 = vmatpush1.msra.mxu0 0.0
    %114 = vmatprep.subr.mxu0 0.0
    %115 = vmatpush1.msra.mxu0 0.0
    %116 = vmatprep.subr.mxu0 0.0
    %117 = vmatpush1.msra.mxu0 0.0
    %118 = vmatprep.subr.mxu0 0.0
    %119 = vmatpush1.msra.mxu0 0.0
    %120 = vmatprep.subr.mxu0 0.0
    %121 = vmatpush1.msra.mxu0 0.0
    %122 = vmatprep.subr.mxu0 0.0
    %123 = vmatpush1.msra.mxu0 0.0
    %124 = vmatprep.subr.mxu0 0.0
    %125 = vmatpush1.msra.mxu0 0.0
    %126 = vmatprep.subr.mxu0 0.0
    %127 = vmatpush1.msra.mxu0 0.0
    %128 = vmatprep.subr.mxu0 0.0
    %129 = vmatpush1.msra.mxu0 0.0
    %130 = vmatprep.mubr.f32.mxu0 0.0
    %131 = vmatmul.mubr.f32.gmra.mrb[0].mxu0 %v64
    %v132 = vpop.f32.mrb[0].mxu0
    %v133 = vadd.f32 0.0, %v132
    %v134 = vpop.f32.mrb[0].mxu0
    %135 = vdwg.mxu0
    %136 = vst [vmem:[#allocation5] sm:$0xff] %v133
    // Predicated region
    $region14: #{tpu_custom_call.1} parent=1 // pred_check
      _
    $region15: #{tpu_custom_call.1} parent=1 // pred_check_branch
      %138 = sbr.rel (0) target = $region17
    $region16: #{tpu_custom_call.1} parent=1 // pred_region
      %s140 = ssub.s32 128, 128
      %141 = vsyncadd [#allocation4], %s140
      %s143 = sshll.u32 [#allocation5], 4
      %s144 = int_to_ptr.vmem [resolvable:$true] %s143
      %146 = dma.vmem_to_hbm [thread:$0]  %s144, 128, %s2, [#allocation4]
    $region17: #{tpu_custom_call.1} parent=1 // pred_fallthru
      _
    // Predicated region
    $region18: #{tpu_custom_call.1} parent=1 // pred_check
      _
    $region19: #{tpu_custom_call.1} parent=1 // pred_check_branch
      %148 = sbr.rel (0) target = $region21
    $region20: #{tpu_custom_call.1} parent=1 // pred_region
      %149 = dma.done [#allocation4], 128
    $region21: #{tpu_custom_call.1} parent=1 // pred_fallthru
      _
    %150 = vsyncpa [#allocation3], 1
    %151 = vsyncpa [#allocation4], 1

</llo_original>
